<compile_context>
chip_gen: v6e
topology: v6e:2x2x1
jax: 0.10.0
libtpu: 0.0.40
codegen_flags: <defaults>
</compile_context>

<pallas_src>
import jax
import jax.numpy as jnp
from jax.experimental import pallas as pl
from jax.experimental.pallas import tpu as pltpu

EPS = 1e-3


def _make_conv_bn_kernel(inv_count):
    def kernel(x_ref, w_ref, gamma_ref, beta_ref, o_ref,
               sum_ref, sumsq_ref, scale_ref, shift_ref):
        # x_ref: (Cin, HW)  w_ref: (Cout, Cin)  gamma/beta: (Cout, 1)
        # o_ref: (Cout, HW) scratch: (Cout, 1) f32 each
        phase = pl.program_id(0)
        n = pl.program_id(1)

        # Native-bf16 MXU matmul with f32 accumulation: y = W @ x -> (Cout, HW)
        x = x_ref[...].astype(jnp.bfloat16)
        w = w_ref[...].astype(jnp.bfloat16)
        y = jnp.dot(w, x, preferred_element_type=jnp.float32)

        @pl.when(phase == 0)
        def _accumulate_stats():
            @pl.when(n == 0)
            def _init():
                sum_ref[...] = jnp.zeros_like(sum_ref)
                sumsq_ref[...] = jnp.zeros_like(sumsq_ref)
            sum_ref[...] += jnp.sum(y, axis=1, keepdims=True)
            sumsq_ref[...] += jnp.sum(y * y, axis=1, keepdims=True)

        @pl.when(phase == 1)
        def _normalize():
            @pl.when(n == 0)
            def _finalize_stats():
                mean = sum_ref[...] * inv_count
                var = sumsq_ref[...] * inv_count - mean * mean
                var = jnp.maximum(var, 0.0)  # guard E[y^2]-E[y]^2 cancellation
                inv_std = jax.lax.rsqrt(var + EPS)
                scale = gamma_ref[...] * inv_std
                scale_ref[...] = scale
                shift_ref[...] = beta_ref[...] - mean * scale
            # Single fused affine pass over the (Cout, HW) tile, lane-dense store.
            o_ref[...] = (y * scale_ref[...] + shift_ref[...]).astype(o_ref.dtype)

    return kernel


def conv2d_1x1_batchnorm(x_nchw, conv_w, gamma, beta):
    """x_nchw: (N, Cin, H, W) f32; conv_w: (Cout, Cin, 1, 1); gamma/beta: (Cout,)."""
    N, Cin, H, W = x_nchw.shape
    Cout = conv_w.shape[0]
    HW = H * W

    # Free reshapes only -- no transposes.
    x3 = x_nchw.reshape(N, Cin, HW)
    w2 = conv_w.reshape(Cout, Cin)
    gamma2 = gamma.reshape(Cout, 1).astype(jnp.float32)
    beta2 = beta.reshape(Cout, 1).astype(jnp.float32)

    kernel = _make_conv_bn_kernel(1.0 / float(N * HW))

    cost = pl.CostEstimate(
        flops=2 * (2 * N * HW * Cin * Cout),        # matmul in both phases
        transcendentals=Cout,                        # rsqrt
        bytes_accessed=4 * (2 * N * Cin * HW + 2 * Cout * Cin
                            + N * Cout * HW + 4 * Cout),
    )

    out3 = pl.pallas_call(
        kernel,
        out_shape=jax.ShapeDtypeStruct((N, Cout, HW), jnp.float32),
        grid_spec=pltpu.PrefetchScalarGridSpec(
            num_scalar_prefetch=0,
            grid=(2, N),  # (phase, batch); phase 0 = stats, phase 1 = normalize
            in_specs=[
                pl.BlockSpec((None, Cin, HW), lambda p, n: (n, 0, 0)),  # x[n]
                pl.BlockSpec((Cout, Cin), lambda p, n: (0, 0)),          # W
                pl.BlockSpec((Cout, 1), lambda p, n: (0, 0)),            # gamma
                pl.BlockSpec((Cout, 1), lambda p, n: (0, 0)),            # beta
            ],
            out_specs=pl.BlockSpec((None, Cout, HW), lambda p, n: (n, 0, 0)),
            scratch_shapes=[
                pltpu.VMEM((Cout, 1), jnp.float32),  # sum
                pltpu.VMEM((Cout, 1), jnp.float32),  # sum of squares
                pltpu.VMEM((Cout, 1), jnp.float32),  # folded scale
                pltpu.VMEM((Cout, 1), jnp.float32),  # folded shift
            ],
        ),
        compiler_params=pltpu.CompilerParams(
            dimension_semantics=("arbitrary", "arbitrary"),
        ),
        cost_estimate=cost,
    )(x3, w2, gamma2, beta2)

    # Free reshape back to NCHW.
    return out3.reshape(N, Cout, H, W)


if __name__ == "__main__":
    key = jax.random.PRNGKey(0)
    k_x, k_w, k_g, k_b = jax.random.split(key, 4)

    # Small shapes consistent with the module: Cin/Cout fixed by the layers,
    # spatial kept small (module runs 1x144x56x56; we exercise batch stats too).
    N, Cin, H, W, Cout = 2, 144, 16, 16, 40

    x = jax.random.normal(k_x, (N, Cin, H, W), dtype=jnp.float32)
    conv_w = jax.random.normal(k_w, (Cout, Cin, 1, 1), dtype=jnp.float32) * (
        1.0 / jnp.sqrt(Cin)
    )
    gamma = 1.0 + 0.1 * jax.random.normal(k_g, (Cout,), dtype=jnp.float32)
    beta = 0.1 * jax.random.normal(k_b, (Cout,), dtype=jnp.float32)

    out = conv2d_1x1_batchnorm(x, conv_w, gamma, beta)
    jax.block_until_ready(out)

    # Reference in plain f32 JAX: 1x1 conv + training-mode BN (batch mean, biased var).
    y_ref = jnp.einsum("nchw,oc->nohw", x, conv_w.reshape(Cout, Cin))
    m = jnp.mean(y_ref, axis=(0, 2, 3), keepdims=True)
    v = jnp.mean((y_ref - m) ** 2, axis=(0, 2, 3), keepdims=True)
    ref = (y_ref - m) * jax.lax.rsqrt(v + EPS) * gamma.reshape(1, Cout, 1, 1) + \
        beta.reshape(1, Cout, 1, 1)

    assert out.shape == (N, Cout, H, W)
    # Kernel uses bf16 MXU inputs (f32 accumulation) -> compare against the
    # f32 reference with bf16-appropriate tolerance.
    assert jnp.allclose(out, ref, atol=5e-2, rtol=5e-2)

    print("KERNEL_OK")
</pallas_src>

<mosaic_0001>
module attributes {stable_mosaic.version = 11 : i64} {
  func.func @kernel(%arg0: i32, %arg1: i32, %arg2: memref<1x144x256xf32, #tpu.memory_space<vmem>>, %arg3: memref<40x144xf32, #tpu.memory_space<vmem>>, %arg4: memref<40x1xf32, #tpu.memory_space<vmem>>, %arg5: memref<40x1xf32, #tpu.memory_space<vmem>>, %arg6: memref<1x40x256xf32, #tpu.memory_space<vmem>>, %arg7: memref<40x1xf32, #tpu.memory_space<vmem>>, %arg8: memref<40x1xf32, #tpu.memory_space<vmem>>, %arg9: memref<40x1xf32, #tpu.memory_space<vmem>>, %arg10: memref<40x1xf32, #tpu.memory_space<vmem>>) attributes {dimension_semantics = [#tpu.dimension_semantics<arbitrary>, #tpu.dimension_semantics<arbitrary>], iteration_bounds = array<i64: 2, 2>, scalar_prefetch = 0 : i64, scratch_operands = 4 : i64, tpu.core_type = #tpu.core_type<tc>, window_params = [{transform_indices = @transform_0, window_bounds = array<i64: 1, 144, 256>}, {pipeline_mode = #tpu.pipeline_mode<synchronous>, transform_indices = @transform_1, window_bounds = array<i64: 40, 144>}, {pipeline_mode = #tpu.pipeline_mode<synchronous>, transform_indices = @transform_2, window_bounds = array<i64: 40, 1>}, {pipeline_mode = #tpu.pipeline_mode<synchronous>, transform_indices = @transform_3, window_bounds = array<i64: 40, 1>}, {transform_indices = @transform_4, window_bounds = array<i64: 1, 40, 256>}]} {
    %c0 = arith.constant 0 : index
    %c0_0 = arith.constant 0 : index
    %c0_1 = arith.constant 0 : index
    %0 = vector.load %arg2[%c0, %c0_0, %c0_1] : memref<1x144x256xf32, #tpu.memory_space<vmem>>, vector<1x144x256xf32>
    %1 = vector.shape_cast %0 : vector<1x144x256xf32> to vector<144x256xf32>
    %2 = arith.truncf %1 : vector<144x256xf32> to vector<144x256xbf16>
    %c0_2 = arith.constant 0 : index
    %c0_3 = arith.constant 0 : index
    %3 = vector.load %arg3[%c0_2, %c0_3] : memref<40x144xf32, #tpu.memory_space<vmem>>, vector<40x144xf32>
    %4 = arith.truncf %3 : vector<40x144xf32> to vector<40x144xbf16>
    %cst = arith.constant dense<0.000000e+00> : vector<40x256xf32>
    %5 = tpu.matmul %4, %2, %cst {dimension_numbers = #tpu.dot_dimension_numbers<[1], [0], [0], [1], [0, 0, 1, 1], [], []>} : vector<40x144xbf16>, vector<144x256xbf16>, vector<40x256xf32> -> vector<40x256xf32>
    %c0_i32 = arith.constant 0 : i32
    %6 = arith.cmpi eq, %arg0, %c0_i32 : i32
    %7 = arith.extui %6 : i1 to i32
    %c0_i32_4 = arith.constant 0 : i32
    %8 = arith.cmpi ne, %7, %c0_i32_4 : i32
    scf.if %8 {
      %c0_i32_6 = arith.constant 0 : i32
      %12 = arith.cmpi eq, %arg1, %c0_i32_6 : i32
      %13 = arith.extui %12 : i1 to i32
      %c0_i32_7 = arith.constant 0 : i32
      %14 = arith.cmpi ne, %13, %c0_i32_7 : i32
      scf.if %14 {
        %cst_18 = arith.constant 0.000000e+00 : f32
        %26 = vector.broadcast %cst_18 : f32 to vector<40x1xf32>
        %c0_19 = arith.constant 0 : index
        %c0_20 = arith.constant 0 : index
        %27 = vector.load %arg7[%c0_19, %c0_20] : memref<40x1xf32, #tpu.memory_space<vmem>>, vector<40x1xf32>
        tpu.vector_store %arg7[%c0_19, %c0_20], %26 {strides = array<i32>} : memref<40x1xf32, #tpu.memory_space<vmem>>, vector<40x1xf32>,
        %cst_21 = arith.constant 0.000000e+00 : f32
        %28 = vector.broadcast %cst_21 : f32 to vector<40x1xf32>
        %c0_22 = arith.constant 0 : index
        %c0_23 = arith.constant 0 : index
        %29 = vector.load %arg8[%c0_22, %c0_23] : memref<40x1xf32, #tpu.memory_space<vmem>>, vector<40x1xf32>
        tpu.vector_store %arg8[%c0_22, %c0_23], %28 {strides = array<i32>} : memref<40x1xf32, #tpu.memory_space<vmem>>, vector<40x1xf32>,
      } else {
      }
      %c0_8 = arith.constant 0 : index
      %c0_9 = arith.constant 0 : index
      %15 = vector.load %arg7[%c0_8, %c0_9] : memref<40x1xf32, #tpu.memory_space<vmem>>, vector<40x1xf32>
      %cst_10 = arith.constant dense<0.000000e+00> : vector<40xf32>
      %16 = vector.multi_reduction <add>, %5, %cst_10 [1] : vector<40x256xf32> to vector<40xf32>
      %17 = vector.shape_cast %16 : vector<40xf32> to vector<40x1xf32>
      %18 = arith.addf %15, %17 : vector<40x1xf32>
      %c0_11 = arith.constant 0 : index
      %c0_12 = arith.constant 0 : index
      %19 = vector.load %arg7[%c0_11, %c0_12] : memref<40x1xf32, #tpu.memory_space<vmem>>, vector<40x1xf32>
      tpu.vector_store %arg7[%c0_11, %c0_12], %18 {strides = array<i32>} : memref<40x1xf32, #tpu.memory_space<vmem>>, vector<40x1xf32>,
      %c0_13 = arith.constant 0 : index
      %c0_14 = arith.constant 0 : index
      %20 = vector.load %arg8[%c0_13, %c0_14] : memref<40x1xf32, #tpu.memory_space<vmem>>, vector<40x1xf32>
      %21 = arith.mulf %5, %5 : vector<40x256xf32>
      %cst_15 = arith.constant dense<0.000000e+00> : vector<40xf32>
      %22 = vector.multi_reduction <add>, %21, %cst_15 [1] : vector<40x256xf32> to vector<40xf32>
      %23 = vector.shape_cast %22 : vector<40xf32> to vector<40x1xf32>
      %24 = arith.addf %20, %23 : vector<40x1xf32>
      %c0_16 = arith.constant 0 : index
      %c0_17 = arith.constant 0 : index
      %25 = vector.load %arg8[%c0_16, %c0_17] : memref<40x1xf32, #tpu.memory_space<vmem>>, vector<40x1xf32>
      tpu.vector_store %arg8[%c0_16, %c0_17], %24 {strides = array<i32>} : memref<40x1xf32, #tpu.memory_space<vmem>>, vector<40x1xf32>,
    } else {
    }
    %c1_i32 = arith.constant 1 : i32
    %9 = arith.cmpi eq, %arg0, %c1_i32 : i32
    %10 = arith.extui %9 : i1 to i32
    %c0_i32_5 = arith.constant 0 : i32
    %11 = arith.cmpi ne, %10, %c0_i32_5 : i32
    scf.if %11 {
      %c0_i32_6 = arith.constant 0 : i32
      %12 = arith.cmpi eq, %arg1, %c0_i32_6 : i32
      %13 = arith.extui %12 : i1 to i32
      %c0_i32_7 = arith.constant 0 : i32
      %14 = arith.cmpi ne, %13, %c0_i32_7 : i32
      scf.if %14 {
        %c0_15 = arith.constant 0 : index
        %c0_16 = arith.constant 0 : index
        %24 = vector.load %arg7[%c0_15, %c0_16] : memref<40x1xf32, #tpu.memory_space<vmem>>, vector<40x1xf32>
        %cst_17 = arith.constant 0.001953125 : f32
        %25 = vector.broadcast %cst_17 : f32 to vector<40x1xf32>
        %26 = arith.mulf %24, %25 : vector<40x1xf32>
        %c0_18 = arith.constant 0 : index
        %c0_19 = arith.constant 0 : index
        %27 = vector.load %arg8[%c0_18, %c0_19] : memref<40x1xf32, #tpu.memory_space<vmem>>, vector<40x1xf32>
        %cst_20 = arith.constant 0.001953125 : f32
        %28 = vector.broadcast %cst_20 : f32 to vector<40x1xf32>
        %29 = arith.mulf %27, %28 : vector<40x1xf32>
        %30 = arith.mulf %26, %26 : vector<40x1xf32>
        %31 = arith.subf %29, %30 : vector<40x1xf32>
        %cst_21 = arith.constant 0.000000e+00 : f32
        %32 = vector.broadcast %cst_21 : f32 to vector<40x1xf32>
        %33 = arith.maximumf %31, %32 : vector<40x1xf32>
        %cst_22 = arith.constant 1.000000e-03 : f32
        %34 = vector.broadcast %cst_22 : f32 to vector<40x1xf32>
        %35 = arith.addf %33, %34 : vector<40x1xf32>
        %36 = math.rsqrt %35 : vector<40x1xf32>
        %c0_23 = arith.constant 0 : index
        %c0_24 = arith.constant 0 : index
        %37 = vector.load %arg4[%c0_23, %c0_24] : memref<40x1xf32, #tpu.memory_space<vmem>>, vector<40x1xf32>
        %38 = arith.mulf %37, %36 : vector<40x1xf32>
        %c0_25 = arith.constant 0 : index
        %c0_26 = arith.constant 0 : index
        %39 = vector.load %arg9[%c0_25, %c0_26] : memref<40x1xf32, #tpu.memory_space<vmem>>, vector<40x1xf32>
        tpu.vector_store %arg9[%c0_25, %c0_26], %38 {strides = array<i32>} : memref<40x1xf32, #tpu.memory_space<vmem>>, vector<40x1xf32>,
        %c0_27 = arith.constant 0 : index
        %c0_28 = arith.constant 0 : index
        %40 = vector.load %arg5[%c0_27, %c0_28] : memref<40x1xf32, #tpu.memory_space<vmem>>, vector<40x1xf32>
        %41 = arith.mulf %26, %38 : vector<40x1xf32>
        %42 = arith.subf %40, %41 : vector<40x1xf32>
        %c0_29 = arith.constant 0 : index
        %c0_30 = arith.constant 0 : index
        %43 = vector.load %arg10[%c0_29, %c0_30] : memref<40x1xf32, #tpu.memory_space<vmem>>, vector<40x1xf32>
        tpu.vector_store %arg10[%c0_29, %c0_30], %42 {strides = array<i32>} : memref<40x1xf32, #tpu.memory_space<vmem>>, vector<40x1xf32>,
      } else {
      }
      %c0_8 = arith.constant 0 : index
      %c0_9 = arith.constant 0 : index
      %15 = vector.load %arg9[%c0_8, %c0_9] : memref<40x1xf32, #tpu.memory_space<vmem>>, vector<40x1xf32>
      %16 = vector.broadcast %15 : vector<40x1xf32> to vector<40x256xf32>
      %17 = arith.mulf %5, %16 : vector<40x256xf32>
      %c0_10 = arith.constant 0 : index
      %c0_11 = arith.constant 0 : index
      %18 = vector.load %arg10[%c0_10, %c0_11] : memref<40x1xf32, #tpu.memory_space<vmem>>, vector<40x1xf32>
      %19 = vector.broadcast %18 : vector<40x1xf32> to vector<40x256xf32>
      %20 = arith.addf %17, %19 : vector<40x256xf32>
      %c0_12 = arith.constant 0 : index
      %c0_13 = arith.constant 0 : index
      %c0_14 = arith.constant 0 : index
      %21 = vector.load %arg6[%c0_12, %c0_13, %c0_14] : memref<1x40x256xf32, #tpu.memory_space<vmem>>, vector<1x40x256xf32>
      %22 = vector.shape_cast %21 : vector<1x40x256xf32> to vector<40x256xf32>
      %23 = vector.shape_cast %20 : vector<40x256xf32> to vector<1x40x256xf32>
      tpu.vector_store %arg6[%c0_12, %c0_13, %c0_14], %23 {strides = array<i32>} : memref<1x40x256xf32, #tpu.memory_space<vmem>>, vector<1x40x256xf32>,
    } else {
    }
    return
  }
  func.func @transform_0(%arg0: i32, %arg1: i32) -> (i32, i32, i32) {
    %c0_i32 = arith.constant 0 : i32
    %c0_i32_0 = arith.constant 0 : i32
    %c0_i32_1 = arith.constant 0 : i32
    return %arg1, %c0_i32, %c0_i32_0 : i32, i32, i32
  }
  func.func @transform_1(%arg0: i32, %arg1: i32) -> (i32, i32) {
    %c0_i32 = arith.constant 0 : i32
    %c0_i32_0 = arith.constant 0 : i32
    %c0_i32_1 = arith.constant 0 : i32
    return %c0_i32, %c0_i32_0 : i32, i32
  }
  func.func @transform_2(%arg0: i32, %arg1: i32) -> (i32, i32) {
    %c0_i32 = arith.constant 0 : i32
    %c0_i32_0 = arith.constant 0 : i32
    %c0_i32_1 = arith.constant 0 : i32
    return %c0_i32, %c0_i32_0 : i32, i32
  }
  func.func @transform_3(%arg0: i32, %arg1: i32) -> (i32, i32) {
    %c0_i32 = arith.constant 0 : i32
    %c0_i32_0 = arith.constant 0 : i32
    %c0_i32_1 = arith.constant 0 : i32
    return %c0_i32, %c0_i32_0 : i32, i32
  }
  func.func @transform_4(%arg0: i32, %arg1: i32) -> (i32, i32, i32) {
    %c0_i32 = arith.constant 0 : i32
    %c0_i32_0 = arith.constant 0 : i32
    %c0_i32_1 = arith.constant 0 : i32
    return %arg1, %c0_i32, %c0_i32_0 : i32, i32, i32
  }
}

</mosaic_0001>

<llo_original>
// kernel: tpu_custom_call.1
$region0: #{tpu_custom_call.1}
  #allocation0 [shape = 'u32[]', space=smem, size = 0x4, offset = 0x4, fixed_abs, tag = 'smem constant byte address 0x4 - core index']
  #allocation1 [shape = 'u32[144,128]{1,0:T(1,128)}', space=vmem, size = 0x12000, scoped, tag = 'internal scratch']
  #allocation2 [shape = 'f32[40,1]{1,0:T(8,128)}', space=vmem, size = 0x5000, scoped, tag = 'scratch operand']
  #allocation3 [shape = 'f32[40,1]{1,0:T(8,128)}', space=vmem, size = 0x5000, scoped, tag = 'scratch operand']
  #allocation4 [shape = 'f32[40,1]{1,0:T(8,128)}', space=vmem, size = 0x5000, scoped, tag = 'scratch operand']
  #allocation5 [shape = 'f32[40,1]{1,0:T(8,128)}', space=vmem, size = 0x5000, scoped, tag = 'scratch operand']
  %s0 = inlined_call_operand.hbm [shape: f32[2,144,256], index: 0, kind: input, shape index: {}]
  %s1 = inlined_call_operand.vmem [shape: f32[40,144], index: 1, kind: input, shape index: {}]
  %s2 = inlined_call_operand.vmem [shape: f32[40,1], index: 2, kind: input, shape index: {}]
  %s3 = inlined_call_operand.vmem [shape: f32[40,1], index: 3, kind: input, shape index: {}]
  %s4 = inlined_call_operand.hbm [shape: f32[2,40,256], index: 4, kind: output, shape index: {}]
  %s5 = sld [smem:[#allocation0]]
  $region69: #{tpu_custom_call.1} parent=0
    _
  %s7 = ssub.s32 1, %s5
  %s8 = scalar_select 0, %s7, %s5
  $region1: #{tpu_custom_call.1} parent=0
    #allocation6 [shape = 'u8[294912]{0}', space=vmem, size = 0x48000, scoped, tag = 'input window, operand 0']
    #allocation7 [shape = 's32[2]{0}', space=sflag, size = 0x8, scoped, tag = 'scoped memory for tpu_custom_call.1']
    #allocation8 [shape = 's32[2]{0}', space=sflag, size = 0x8, scoped, tag = 'scoped memory for tpu_custom_call.1']
    #allocation9 [shape = 'u8[81920]{0}', space=vmem, size = 0x14000, scoped, tag = 'output window, operand 0']
    %9 = vsyncpa [#allocation7], 0
    %s10 = scalar_lea.sflag [#allocation7], 1
    %11 = vsyncpa %s10, 0
    %12 = vsyncpa [#allocation8], 0
    %s13 = scalar_lea.sflag [#allocation8], 1
    %14 = vsyncpa %s13, 0
    loop: start=0, step=1, limit=6
    $region2: #{tpu_custom_call.1} parent=1 // loop_pre_header
      _
    $region3: #{tpu_custom_call.1} parent=1 // loop_header
      %s16 = sphi 0, %s20
      %p17 = scmp.ge.s32.totalorder %s16, 6
      %s23 = sphi 0, %s35
      %s24 = sphi 0, %s31
      %s25 = sphi 0, %s23
      %s26 = sphi 0, %s24
      %s27 = sphi 0, %s25
      %s28 = sphi 0, %s26
      %s38 = sphi 0, %s40
      %s41 = sphi 0, %s38
      %s42 = sphi 0, %s41
      %s58 = sphi 0, %s42
      %s62 = sphi 0, %s62
      %s64 = sphi 0, %s62
      %s65 = sphi 0, %s64
      %s79 = sphi 0, %s65
      %s83 = sphi 0, %s83
      %s85 = sphi 0, %s83
      %s86 = sphi 0, %s85
      %s100 = sphi 0, %s86
      %s104 = sphi 0, %s104
      %s106 = sphi 0, %s104
      %s107 = sphi 0, %s106
      %s121 = sphi 0, %s107
      %s127 = sphi 0, %s129
      %s130 = sphi 0, %s127
      %s131 = sphi 0, %s130
      %s147 = sphi 0, %s131
    $region4: #{tpu_custom_call.1} parent=1 // loop_header_branch
      %19 = sbr.rel (%p17) target = $region8
    $region5: #{tpu_custom_call.1} parent=1 // loop_body
      %s21 = ssub.s32 %s16, 1
      %s22 = ssub.s32 %s16, 2
      %s29 = sadd.s32 1, %s24
      %p30 = scmp.ge.s32.totalorder %s29, 2
      %s31 = scalar_select %p30, 0, %s29
      %s32 = sadd.s32 1, %s23
      %s33 = scalar_select %p30, %s32, %s23
      %p34 = scmp.ge.s32.totalorder %s33, 2
      %s35 = scalar_select %p34, 0, %s33
      %s36 = ssub.s32 %s24, %s31
      %p37 = scmp.eq.s32.totalorder %s36, 0
      %s39 = sadd.s32 %s38, 1
      %s40 = scalar_select %p37, %s38, %s39
      %p43 = pneg %p37
      %p44 = scmp.eq.s32.totalorder %s16, 3
      %p45 = por %p43, %p44
      %p46 = scmp.ne.s32.totalorder %s38, %s41
      %p47 = scmp.eq.s32.totalorder %s16, 0
      %p48 = por %p46, %p47
      %p49 = scmp.ne.s32.totalorder %s38, %s41
      %p50 = scmp.eq.s32.totalorder %s21, 3
      %p51 = por %p49, %p50
      %p52 = scmp.ne.s32.totalorder %s41, %s42
      %p53 = scmp.eq.s32.totalorder %s21, 0
      %p54 = por %p52, %p53
      %p55 = scmp.ne.s32.totalorder %s41, %s42
      %p56 = scmp.eq.s32.totalorder %s22, 3
      %p57 = por %p55, %p56
      %p59 = scmp.ne.s32.totalorder %s42, %s58
      %p60 = scmp.eq.s32.totalorder %s22, 0
      %p61 = por %p59, %p60
      %s63 = sadd.s32 %s62, 1
      %p66 = scmp.eq.s32.totalorder %s16, 3
      %p67 = scmp.ne.s32.totalorder %s62, %s64
      %p68 = scmp.eq.s32.totalorder %s16, 0
      %p69 = por %p67, %p68
      %p70 = scmp.ne.s32.totalorder %s62, %s64
      %p71 = scmp.eq.s32.totalorder %s21, 3
      %p72 = por %p70, %p71
      %p73 = scmp.ne.s32.totalorder %s64, %s65
      %p74 = scmp.eq.s32.totalorder %s21, 0
      %p75 = por %p73, %p74
      %p76 = scmp.ne.s32.totalorder %s64, %s65
      %p77 = scmp.eq.s32.totalorder %s22, 3
      %p78 = por %p76, %p77
      %p80 = scmp.ne.s32.totalorder %s65, %s79
      %p81 = scmp.eq.s32.totalorder %s22, 0
      %p82 = por %p80, %p81
      %s84 = sadd.s32 %s83, 1
      %p87 = scmp.eq.s32.totalorder %s16, 3
      %p88 = scmp.ne.s32.totalorder %s83, %s85
      %p89 = scmp.eq.s32.totalorder %s16, 0
      %p90 = por %p88, %p89
      %p91 = scmp.ne.s32.totalorder %s83, %s85
      %p92 = scmp.eq.s32.totalorder %s21, 3
      %p93 = por %p91, %p92
      %p94 = scmp.ne.s32.totalorder %s85, %s86
      %p95 = scmp.eq.s32.totalorder %s21, 0
      %p96 = por %p94, %p95
      %p97 = scmp.ne.s32.totalorder %s85, %s86
      %p98 = scmp.eq.s32.totalorder %s22, 3
      %p99 = por %p97, %p98
      %p101 = scmp.ne.s32.totalorder %s86, %s100
      %p102 = scmp.eq.s32.totalorder %s22, 0
      %p103 = por %p101, %p102
      %s105 = sadd.s32 %s104, 1
      %p108 = scmp.eq.s32.totalorder %s16, 3
      %p109 = scmp.ne.s32.totalorder %s104, %s106
      %p110 = scmp.eq.s32.totalorder %s16, 0
      %p111 = por %p109, %p110
      %p112 = scmp.ne.s32.totalorder %s104, %s106
      %p113 = scmp.eq.s32.totalorder %s21, 3
      %p114 = por %p112, %p113
      %p115 = scmp.ne.s32.totalorder %s106, %s107
      %p116 = scmp.eq.s32.totalorder %s21, 0
      %p117 = por %p115, %p116
      %p118 = scmp.ne.s32.totalorder %s106, %s107
      %p119 = scmp.eq.s32.totalorder %s22, 3
      %p120 = por %p118, %p119
      %p122 = scmp.ne.s32.totalorder %s107, %s121
      %p123 = scmp.eq.s32.totalorder %s22, 0
      %p124 = por %p122, %p123
      %s125 = ssub.s32 %s24, %s31
      %p126 = scmp.eq.s32.totalorder %s125, 0
      %s128 = sadd.s32 %s127, 1
      %s129 = scalar_select %p126, %s127, %s128
      %p132 = pneg %p126
      %p133 = scmp.eq.s32.totalorder %s16, 3
      %p134 = por %p132, %p133
      %p135 = scmp.ne.s32.totalorder %s127, %s130
      %p136 = scmp.eq.s32.totalorder %s16, 0
      %p137 = por %p135, %p136
      %p138 = scmp.ne.s32.totalorder %s127, %s130
      %p139 = scmp.eq.s32.totalorder %s21, 3
      %p140 = por %p138, %p139
      %p141 = scmp.ne.s32.totalorder %s130, %s131
      %p142 = scmp.eq.s32.totalorder %s21, 0
      %p143 = por %p141, %p142
      %p144 = scmp.ne.s32.totalorder %s130, %s131
      %p145 = scmp.eq.s32.totalorder %s22, 3
      %p146 = por %p144, %p145
      %p148 = scmp.ne.s32.totalorder %s131, %s147
      %p149 = scmp.eq.s32.totalorder %s22, 0
      %p150 = por %p148, %p149
      %p151 = scmp.le.s32.totalorder 1, %s16
      %p152 = scmp.lt.s32.totalorder %s16, 5
      %p153 = pnand %p151, %p152
      %p154 = pneg %p153
      // Predicated region
      $region9: #{tpu_custom_call.1} parent=5 // pred_check
        _
      $region10: #{tpu_custom_call.1} parent=5 // pred_check_branch
        %156 = sbr.rel (%p153) target = $region12
      $region11: #{tpu_custom_call.1} parent=5 // pred_region
        %s157 = ssub.s32 %s16, 1
        // Predicated region
        $region13: #{tpu_custom_call.1} parent=11 // pred_check
          %p158 = pneg %p75
        $region14: #{tpu_custom_call.1} parent=11 // pred_check_branch
          %160 = sbr.rel (%p158) target = $region16
        $region15: #{tpu_custom_call.1} parent=11 // pred_region
          _
        $region16: #{tpu_custom_call.1} parent=11 // pred_fallthru
          _
        // Predicated region
        $region17: #{tpu_custom_call.1} parent=11 // pred_check
          %p161 = pneg %p96
        $region18: #{tpu_custom_call.1} parent=11 // pred_check_branch
          %163 = sbr.rel (%p161) target = $region20
        $region19: #{tpu_custom_call.1} parent=11 // pred_region
          _
        $region20: #{tpu_custom_call.1} parent=11 // pred_fallthru
          _
        // Predicated region
        $region21: #{tpu_custom_call.1} parent=11 // pred_check
          %p164 = pneg %p117
        $region22: #{tpu_custom_call.1} parent=11 // pred_check_branch
          %166 = sbr.rel (%p164) target = $region24
        $region23: #{tpu_custom_call.1} parent=11 // pred_region
          _
        $region24: #{tpu_custom_call.1} parent=11 // pred_fallthru
          _
      $region12: #{tpu_custom_call.1} parent=5 // pred_fallthru
        _
      %p167 = scmp.lt.s32.totalorder %s16, 4
      // Predicated region
      $region25: #{tpu_custom_call.1} parent=5 // pred_check
        %p168 = pneg %p167
      $region26: #{tpu_custom_call.1} parent=5 // pred_check_branch
        %170 = sbr.rel (%p168) target = $region28
      $region27: #{tpu_custom_call.1} parent=5 // pred_region
        // Predicated region
        $region29: #{tpu_custom_call.1} parent=27 // pred_check
          %p171 = pneg %p48
        $region30: #{tpu_custom_call.1} parent=27 // pred_check_branch
          %173 = sbr.rel (%p171) target = $region32
        $region31: #{tpu_custom_call.1} parent=27 // pred_region
          %s174 = sand.u32 %s38, 1
          %s175 = scalar_lea.sflag [#allocation7], %s174
          %s176 = sand.u32 %s38, 1
          %s177 = smul.addr %s176, 288
          %s178 = scalar_lea.vmem [#allocation6], %s177
          %s180 = ssub.s32 4608, 4608
          %181 = vsyncadd %s175, %s180
          %s182 = smul.addr %s24, 36
          %s183 = smul.addr %s182, 128
          %s184 = scalar_lea.hbm %s0, %s183
          %s185 = sshll.u32 %s178, 4
          %s186 = int_to_ptr.vmem [resolvable:$true] %s185
          %191 = dma.hbm_to_vmem [thread:$0]  %s184, 4608, %s186, %s175, 256, 256, 16
        $region32: #{tpu_custom_call.1} parent=27 // pred_fallthru
          _
      $region28: #{tpu_custom_call.1} parent=5 // pred_fallthru
        _
      %p192 = scmp.le.s32.totalorder 1, %s16
      %p193 = scmp.lt.s32.totalorder %s16, 5
      %p194 = pnand %p192, %p193
      %p195 = pneg %p194
      // Predicated region
      $region33: #{tpu_custom_call.1} parent=5 // pred_check
        _
      $region34: #{tpu_custom_call.1} parent=5 // pred_check_branch
        %197 = sbr.rel (%p194) target = $region36
      $region35: #{tpu_custom_call.1} parent=5 // pred_region
        %s198 = ssub.s32 %s16, 1
        %s199 = sand.u32 %s41, 1
        %s200 = scalar_lea.sflag [#allocation7], %s199
        %s201 = sand.u32 %s41, 1
        %s202 = smul.addr %s201, 288
        %s203 = scalar_lea.vmem [#allocation6], %s202
        // Predicated region
        $region37: #{tpu_custom_call.1} parent=35 // pred_check
          %p204 = pneg %p54
        $region38: #{tpu_custom_call.1} parent=35 // pred_check_branch
          %206 = sbr.rel (%p204) target = $region40
        $region39: #{tpu_custom_call.1} parent=35 // pred_region
          %207 = dma.done %s200, 4608
        $region40: #{tpu_custom_call.1} parent=35 // pred_fallthru
          _
        %s208 = sand.u32 %s41, 1
        %s209 = scalar_lea.sflag [#allocation7], %s208
        %s210 = sand.u32 %s41, 1
        %s211 = smul.addr %s210, 288
        %s212 = scalar_lea.vmem [#allocation6], %s211
        %p213 = pneg %p54
        %p214 = pneg %p51
        %p215 = pneg %p75
        %p216 = pneg %p72
        %p217 = pneg %p96
        %p218 = pneg %p93
        %p219 = pneg %p117
        %p220 = pneg %p114
        %p221 = pneg %p143
        %p222 = pneg %p140
        %s223 = sand.u32 %s130, 1
        %s224 = scalar_lea.sflag [#allocation8], %s223
        %s225 = sand.u32 %s130, 1
        %s226 = smul.addr %s225, 80
        %s227 = scalar_lea.vmem [#allocation9], %s226
        %v229 = vld [vmem:[%s203] sm:$0xff]
        %v230 = vld [vmem:[%s203 + $0x8] sm:$0xff]
        %v231 = vld [vmem:[%s203 + $0x10] sm:$0xff]
        %v232 = vld [vmem:[%s203 + $0x18] sm:$0xff]
        %v233 = vld [vmem:[%s203 + $0x20] sm:$0xff]
        %v234 = vld [vmem:[%s203 + $0x28] sm:$0xff]
        %v235 = vld [vmem:[%s203 + $0x30] sm:$0xff]
        %v236 = vld [vmem:[%s203 + $0x38] sm:$0xff]
        %v237 = vld [vmem:[%s203 + $0x40] sm:$0xff]
        %v238 = vld [vmem:[%s203 + $0x48] sm:$0xff]
        %v239 = vld [vmem:[%s203 + $0x50] sm:$0xff]
        %v240 = vld [vmem:[%s203 + $0x58] sm:$0xff]
        %v241 = vld [vmem:[%s203 + $0x60] sm:$0xff]
        %v242 = vld [vmem:[%s203 + $0x68] sm:$0xff]
        %v243 = vld [vmem:[%s203 + $0x70] sm:$0xff]
        %v244 = vld [vmem:[%s203 + $0x78] sm:$0xff]
        %v245 = vld [vmem:[%s203 + $0x80] sm:$0xff]
        %v246 = vld [vmem:[%s203 + $0x88] sm:$0xff]
        %v247 = vld [vmem:[%s203 + $0x90] sm:$0xff]
        %v248 = vld [vmem:[%s203 + $0x98] sm:$0xff]
        %v249 = vld [vmem:[%s203 + $0xa0] sm:$0xff]
        %v250 = vld [vmem:[%s203 + $0xa8] sm:$0xff]
        %v251 = vld [vmem:[%s203 + $0xb0] sm:$0xff]
        %v252 = vld [vmem:[%s203 + $0xb8] sm:$0xff]
        %v253 = vld [vmem:[%s203 + $0xc0] sm:$0xff]
        %v254 = vld [vmem:[%s203 + $0xc8] sm:$0xff]
        %v255 = vld [vmem:[%s203 + $0xd0] sm:$0xff]
        %v256 = vld [vmem:[%s203 + $0xd8] sm:$0xff]
        %v257 = vld [vmem:[%s203 + $0xe0] sm:$0xff]
        %v258 = vld [vmem:[%s203 + $0xe8] sm:$0xff]
        %v259 = vld [vmem:[%s203 + $0xf0] sm:$0xff]
        %v260 = vld [vmem:[%s203 + $0xf8] sm:$0xff]
        %v261 = vld [vmem:[%s203 + $0x100] sm:$0xff]
        %v262 = vld [vmem:[%s203 + $0x108] sm:$0xff]
        %v263 = vld [vmem:[%s203 + $0x110] sm:$0xff]
        %v264 = vld [vmem:[%s203 + $0x118] sm:$0xff]
        %v265 = vpack.c.bf16 %v231, %v229
        %v266 = vpack.c.bf16 %v232, %v230
        %v267 = vpack.c.bf16 %v235, %v233
        %v268 = vpack.c.bf16 %v236, %v234
        %v269 = vpack.c.bf16 %v239, %v237
        %v270 = vpack.c.bf16 %v240, %v238
        %v271 = vpack.c.bf16 %v243, %v241
        %v272 = vpack.c.bf16 %v244, %v242
        %v273 = vpack.c.bf16 %v247, %v245
        %v274 = vpack.c.bf16 %v248, %v246
        %v275 = vpack.c.bf16 %v251, %v249
        %v276 = vpack.c.bf16 %v252, %v250
        %v277 = vpack.c.bf16 %v255, %v253
        %v278 = vpack.c.bf16 %v256, %v254
        %v279 = vpack.c.bf16 %v259, %v257
        %v280 = vpack.c.bf16 %v260, %v258
        %v281 = vpack.c.bf16 %v263, %v261
        %v282 = vpack.c.bf16 %v264, %v262
        %v283 = vld [vmem:[%s1] sm:$0xff]
        %v284 = vld [vmem:[%s1 + $0x8] sm:$0xff]
        %v285 = vld [vmem:[%s1 + $0x10] sm:$0xff]
        %v286 = vld [vmem:[%s1 + $0x18] sm:$0xff]
        %v287 = vld [vmem:[%s1 + $0x20] sm:$0xff]
        %v288 = vld [vmem:[%s1 + $0x28] sm:$0xff]
        %v289 = vld [vmem:[%s1 + $0x30] sm:$0xff]
        %v290 = vld [vmem:[%s1 + $0x38] sm:$0xff]
        %v291 = vld [vmem:[%s1 + $0x40] sm:$0xff]
        %v292 = vld [vmem:[%s1 + $0x48] sm:$0xff]
        %v293 = vpack.c.bf16 %v285, %v283
        %v294 = vpack.c.bf16 %v286, %v284
        %v295 = vpack.c.bf16 %v289, %v287
        %v296 = vpack.c.bf16 %v290, %v288
        %v297 = vpack.c.bf16 %v291, %v291
        %v298 = vpack.c.bf16 %v292, %v292
        %vm299 = vcmask 130048
        %v301 = vsel %vm299, %v294, 0
        %v304 = vsel %vm299, %v296, 0
        %v307 = vsel %vm299, %v298, 0
        %309 = vmatprep.subr.bf16.mxu0 %v280
        %310 = vmatpush1.bf16.msra.mxu0 %v279
        %311 = vmatprep.subr.bf16.mxu0 %v278
        %312 = vmatpush1.bf16.msra.mxu0 %v277
        %313 = vmatprep.subr.bf16.mxu0 %v276
        %314 = vmatpush1.bf16.msra.mxu0 %v275
        %315 = vmatprep.subr.bf16.mxu0 %v274
        %316 = vmatpush1.bf16.msra.mxu0 %v273
        %317 = vmatprep.subr.bf16.mxu0 %v272
        %318 = vmatpush1.bf16.msra.mxu0 %v271
        %319 = vmatprep.subr.bf16.mxu0 %v270
        %320 = vmatpush1.bf16.msra.mxu0 %v269
        %321 = vmatprep.subr.bf16.mxu0 %v268
        %322 = vmatpush1.bf16.msra.mxu0 %v267
        %323 = vmatprep.subr.bf16.mxu0 %v266
        %324 = vmatpush1.bf16.msra.mxu0 %v265
        %325 = vmatprep.subr.bf16.mxu0 0
        %326 = vmatpush2.bf16.msra.mxu0 0
        %327 = vmatprep.subr.bf16.mxu0 0
        %328 = vmatpush2.bf16.msra.mxu0 0
        %329 = vmatprep.subr.bf16.mxu0 0
        %330 = vmatpush2.bf16.msra.mxu0 0
        %331 = vmatprep.subr.bf16.mxu0 0
        %332 = vmatpush2.bf16.msra.mxu0 0
        %333 = vmatprep.subr.bf16.mxu0 0
        %334 = vmatpush2.bf16.msra.mxu0 0
        %335 = vmatprep.subr.bf16.mxu0 0
        %336 = vmatpush2.bf16.msra.mxu0 0
        %337 = vmatprep.subr.bf16.mxu0 0
        %338 = vmatpush2.bf16.msra.mxu0 0
        %339 = vmatprep.subr.bf16.mxu0 %v282
        %340 = vmatpush2.bf16.msra.mxu0 %v281
        %341 = vmatprep.mubr.bf16.mxu0 %v301
        %342 = vmatmul.mubr.bf16.gmra.mxu0 %v293
        %v343 = vpop.f32.mrf.mxu0
        %v344 = vadd.f32 0.0, %v343
        %v345 = vpop.f32.mrf.mxu0
        %v346 = vadd.f32 0.0, %v345
        %v347 = vpop.f32.mrf.mxu0
        %v348 = vadd.f32 0.0, %v347
        %v349 = vpop.f32.mrf.mxu0
        %v350 = vadd.f32 0.0, %v349
        %351 = vmatprep.mubr.bf16.mxu0 %v304
        %352 = vmatmul.mubr.bf16.gmra.mxu0 %v295
        %v353 = vpop.f32.mrf.mxu0
        %v354 = vadd.f32 0.0, %v353
        %v355 = vpop.f32.mrf.mxu0
        %v356 = vadd.f32 0.0, %v355
        %v357 = vpop.f32.mrf.mxu0
        %v358 = vadd.f32 0.0, %v357
        %v359 = vpop.f32.mrf.mxu0
        %v360 = vadd.f32 0.0, %v359
        %361 = vmatprep.mubr.bf16.mxu0 %v307
        %362 = vmatmul.mubr.bf16.gmra.mxu0 %v297
        %v363 = vpop.f32.mrf.mxu0
        %v364 = vadd.f32 0.0, %v363
        %v365 = vpop.f32.mrf.mxu0
        %v366 = vadd.f32 0.0, %v365
        %v367 = vpop.f32.mrf.mxu0
        %v368 = vpop.f32.mrf.mxu0
        %369 = vdwg.mxu0
        %p370 = scmp.eq.s32.totalorder %s25, 0
        // Predicated region
        $region41: #{tpu_custom_call.1} parent=35 // pred_check
          %p371 = pneg %p370
        $region42: #{tpu_custom_call.1} parent=35 // pred_check_branch
          %373 = sbr.rel (%p371) target = $region44
        $region43: #{tpu_custom_call.1} parent=35 // pred_region
          %p374 = scmp.eq.s32.totalorder %s26, 0
          // Predicated region
          $region45: #{tpu_custom_call.1} parent=43 // pred_check
            %p375 = pneg %p374
          $region46: #{tpu_custom_call.1} parent=43 // pred_check_branch
            %377 = sbr.rel (%p375) target = $region48
          $region47: #{tpu_custom_call.1} parent=43 // pred_region
            %vm378 = vcmask 7168
            %379 = vst.msk [vmem:[#allocation2] sm:$0xff] %vm378, 0.0
            %380 = vst.msk [vmem:[#allocation2 + $0x8] sm:$0xff] %vm378, 0.0
            %381 = vst.msk [vmem:[#allocation2 + $0x10] sm:$0xff] %vm378, 0.0
            %382 = vst.msk [vmem:[#allocation2 + $0x18] sm:$0xff] %vm378, 0.0
            %383 = vst.msk [vmem:[#allocation2 + $0x20] sm:$0xff] %vm378, 0.0
            %384 = vst.msk [vmem:[#allocation3] sm:$0xff] %vm378, 0.0
            %385 = vst.msk [vmem:[#allocation3 + $0x8] sm:$0xff] %vm378, 0.0
            %386 = vst.msk [vmem:[#allocation3 + $0x10] sm:$0xff] %vm378, 0.0
            %387 = vst.msk [vmem:[#allocation3 + $0x18] sm:$0xff] %vm378, 0.0
            %388 = vst.msk [vmem:[#allocation3 + $0x20] sm:$0xff] %vm378, 0.0
          $region48: #{tpu_custom_call.1} parent=43 // pred_fallthru
            _
          %v389 = vld [vmem:[#allocation2] sm:$0xff]
          %v390 = vld [vmem:[#allocation2 + $0x8] sm:$0xff]
          %v391 = vld [vmem:[#allocation2 + $0x10] sm:$0xff]
          %v392 = vld [vmem:[#allocation2 + $0x18] sm:$0xff]
          %v393 = vld [vmem:[#allocation2 + $0x20] sm:$0xff]
          %v394 = vadd.f32 %v344, %v346
          %395 = vadd.xlane.f32.xlu0 %v394
          %v396 = vpop.xlane.xlu0 %395
          %v397 = vadd.f32 %v348, %v350
          %398 = vadd.xlane.f32.xlu0 %v397
          %v399 = vpop.xlane.xlu0 %398
          %v400 = vadd.f32 %v354, %v356
          %401 = vadd.xlane.f32.xlu0 %v400
          %v402 = vpop.xlane.xlu0 %401
          %v403 = vadd.f32 %v358, %v360
          %404 = vadd.xlane.f32.xlu0 %v403
          %v405 = vpop.xlane.xlu0 %404
          %v406 = vadd.f32 %v364, %v366
          %407 = vadd.xlane.f32.xlu0 %v406
          %v408 = vpop.xlane.xlu0 %407
          %v409 = vadd.f32 %v389, %v396
          %v410 = vadd.f32 %v390, %v399
          %v411 = vadd.f32 %v391, %v402
          %v412 = vadd.f32 %v392, %v405
          %v413 = vadd.f32 %v393, %v408
          %vm414 = vcmask 7168
          %415 = vst.msk [vmem:[#allocation2] sm:$0xff] %vm414, %v409
          %416 = vst.msk [vmem:[#allocation2 + $0x8] sm:$0xff] %vm414, %v410
          %417 = vst.msk [vmem:[#allocation2 + $0x10] sm:$0xff] %vm414, %v411
          %418 = vst.msk [vmem:[#allocation2 + $0x18] sm:$0xff] %vm414, %v412
          %419 = vst.msk [vmem:[#allocation2 + $0x20] sm:$0xff] %vm414, %v413
          %v420 = vld [vmem:[#allocation3] sm:$0xff]
          %v421 = vld [vmem:[#allocation3 + $0x8] sm:$0xff]
          %v422 = vld [vmem:[#allocation3 + $0x10] sm:$0xff]
          %v423 = vld [vmem:[#allocation3 + $0x18] sm:$0xff]
          %v424 = vld [vmem:[#allocation3 + $0x20] sm:$0xff]
          %v425 = vmul.f32 %v344, %v344
          %v426 = vmul.f32 %v346, %v346
          %v427 = vmul.f32 %v348, %v348
          %v428 = vmul.f32 %v350, %v350
          %v429 = vmul.f32 %v354, %v354
          %v430 = vmul.f32 %v356, %v356
          %v431 = vmul.f32 %v358, %v358
          %v432 = vmul.f32 %v360, %v360
          %v433 = vmul.f32 %v364, %v364
          %v434 = vmul.f32 %v366, %v366
          %v435 = vadd.f32 %v425, %v426
          %436 = vadd.xlane.f32.xlu0 %v435
          %v437 = vpop.xlane.xlu0 %436
          %v438 = vadd.f32 %v427, %v428
          %439 = vadd.xlane.f32.xlu0 %v438
          %v440 = vpop.xlane.xlu0 %439
          %v441 = vadd.f32 %v429, %v430
          %442 = vadd.xlane.f32.xlu0 %v441
          %v443 = vpop.xlane.xlu0 %442
          %v444 = vadd.f32 %v431, %v432
          %445 = vadd.xlane.f32.xlu0 %v444
          %v446 = vpop.xlane.xlu0 %445
          %v447 = vadd.f32 %v433, %v434
          %448 = vadd.xlane.f32.xlu0 %v447
          %v449 = vpop.xlane.xlu0 %448
          %v450 = vadd.f32 %v420, %v437
          %v451 = vadd.f32 %v421, %v440
          %v452 = vadd.f32 %v422, %v443
          %v453 = vadd.f32 %v423, %v446
          %v454 = vadd.f32 %v424, %v449
          %455 = vst.msk [vmem:[#allocation3] sm:$0xff] %vm414, %v450
          %456 = vst.msk [vmem:[#allocation3 + $0x8] sm:$0xff] %vm414, %v451
          %457 = vst.msk [vmem:[#allocation3 + $0x10] sm:$0xff] %vm414, %v452
          %458 = vst.msk [vmem:[#allocation3 + $0x18] sm:$0xff] %vm414, %v453
          %459 = vst.msk [vmem:[#allocation3 + $0x20] sm:$0xff] %vm414, %v454
        $region44: #{tpu_custom_call.1} parent=35 // pred_fallthru
          _
        %p460 = scmp.eq.s32.totalorder %s25, 1
        // Predicated region
        $region49: #{tpu_custom_call.1} parent=35 // pred_check
          %p461 = pneg %p460
        $region50: #{tpu_custom_call.1} parent=35 // pred_check_branch
          %463 = sbr.rel (%p461) target = $region52
        $region51: #{tpu_custom_call.1} parent=35 // pred_region
          %p464 = scmp.eq.s32.totalorder %s26, 0
          // Predicated region
          $region53: #{tpu_custom_call.1} parent=51 // pred_check
            %p465 = pneg %p464
          $region54: #{tpu_custom_call.1} parent=51 // pred_check_branch
            %467 = sbr.rel (%p465) target = $region56
          $region55: #{tpu_custom_call.1} parent=51 // pred_region
            %v468 = vld [vmem:[#allocation2] sm:$0xff]
            %v469 = vld [vmem:[#allocation2 + $0x8] sm:$0xff]
            %v470 = vld [vmem:[#allocation2 + $0x10] sm:$0xff]
            %v471 = vld [vmem:[#allocation2 + $0x18] sm:$0xff]
            %v472 = vld [vmem:[#allocation2 + $0x20] sm:$0xff]
            %v473 = vmul.f32 %v468, 0.001953125
            %v474 = vmul.f32 %v469, 0.001953125
            %v475 = vmul.f32 %v470, 0.001953125
            %v476 = vmul.f32 %v471, 0.001953125
            %v477 = vmul.f32 %v472, 0.001953125
            %v478 = vld [vmem:[#allocation3] sm:$0xff]
            %v479 = vld [vmem:[#allocation3 + $0x8] sm:$0xff]
            %v480 = vld [vmem:[#allocation3 + $0x10] sm:$0xff]
            %v481 = vld [vmem:[#allocation3 + $0x18] sm:$0xff]
            %v482 = vld [vmem:[#allocation3 + $0x20] sm:$0xff]
            %v483 = vmul.f32 %v478, 0.001953125
            %v484 = vmul.f32 %v479, 0.001953125
            %v485 = vmul.f32 %v480, 0.001953125
            %v486 = vmul.f32 %v481, 0.001953125
            %v487 = vmul.f32 %v482, 0.001953125
            %v488 = vmul.f32 %v473, %v473
            %v489 = vmul.f32 %v474, %v474
            %v490 = vmul.f32 %v475, %v475
            %v491 = vmul.f32 %v476, %v476
            %v492 = vmul.f32 %v477, %v477
            %v493 = vsub.f32 %v483, %v488
            %v494 = vsub.f32 %v484, %v489
            %v495 = vsub.f32 %v485, %v490
            %v496 = vsub.f32 %v486, %v491
            %v497 = vsub.f32 %v487, %v492
            %v498 = vmax.f32 %v493, 0.0
            %v499 = vmax.f32 %v494, 0.0
            %v500 = vmax.f32 %v495, 0.0
            %v501 = vmax.f32 %v496, 0.0
            %v502 = vmax.f32 %v497, 0.0
            %v503 = vadd.f32 %v498, 0.001
            %v504 = vadd.f32 %v499, 0.001
            %v505 = vadd.f32 %v500, 0.001
            %v506 = vadd.f32 %v501, 0.001
            %v507 = vadd.f32 %v502, 0.001
            %v508 = vrsqrt.pop %v503
            %v509 = vrsqrt.pop %v504
            %v510 = vrsqrt.pop %v505
            %v511 = vrsqrt.pop %v506
            %v512 = vrsqrt.pop %v507
            %v513 = vld [vmem:[%s2] sm:$0xff]
            %v514 = vld [vmem:[%s2 + $0x8] sm:$0xff]
            %v515 = vld [vmem:[%s2 + $0x10] sm:$0xff]
            %v516 = vld [vmem:[%s2 + $0x18] sm:$0xff]
            %v517 = vld [vmem:[%s2 + $0x20] sm:$0xff]
            %v518 = vmul.f32 %v513, %v508
            %v519 = vmul.f32 %v514, %v509
            %v520 = vmul.f32 %v515, %v510
            %v521 = vmul.f32 %v516, %v511
            %v522 = vmul.f32 %v517, %v512
            %vm523 = vcmask 7168
            %524 = vst.msk [vmem:[#allocation4] sm:$0xff] %vm523, %v518
            %525 = vst.msk [vmem:[#allocation4 + $0x8] sm:$0xff] %vm523, %v519
            %526 = vst.msk [vmem:[#allocation4 + $0x10] sm:$0xff] %vm523, %v520
            %527 = vst.msk [vmem:[#allocation4 + $0x18] sm:$0xff] %vm523, %v521
            %528 = vst.msk [vmem:[#allocation4 + $0x20] sm:$0xff] %vm523, %v522
            %v529 = vld [vmem:[%s3] sm:$0xff]
            %v530 = vld [vmem:[%s3 + $0x8] sm:$0xff]
            %v531 = vld [vmem:[%s3 + $0x10] sm:$0xff]
            %v532 = vld [vmem:[%s3 + $0x18] sm:$0xff]
            %v533 = vld [vmem:[%s3 + $0x20] sm:$0xff]
            %v534 = vmul.f32 %v473, %v518
            %v535 = vmul.f32 %v474, %v519
            %v536 = vmul.f32 %v475, %v520
            %v537 = vmul.f32 %v476, %v521
            %v538 = vmul.f32 %v477, %v522
            %v539 = vsub.f32 %v529, %v534
            %v540 = vsub.f32 %v530, %v535
            %v541 = vsub.f32 %v531, %v536
            %v542 = vsub.f32 %v532, %v537
            %v543 = vsub.f32 %v533, %v538
            %544 = vst.msk [vmem:[#allocation5] sm:$0xff] %vm523, %v539
            %545 = vst.msk [vmem:[#allocation5 + $0x8] sm:$0xff] %vm523, %v540
            %546 = vst.msk [vmem:[#allocation5 + $0x10] sm:$0xff] %vm523, %v541
            %547 = vst.msk [vmem:[#allocation5 + $0x18] sm:$0xff] %vm523, %v542
            %548 = vst.msk [vmem:[#allocation5 + $0x20] sm:$0xff] %vm523, %v543
          $region56: #{tpu_custom_call.1} parent=51 // pred_fallthru
            _
          %v549 = vld [vmem:[#allocation4] sm:$0xff]
          %v550 = vld [vmem:[#allocation4 + $0x8] sm:$0xff]
          %v551 = vld [vmem:[#allocation4 + $0x10] sm:$0xff]
          %v552 = vld [vmem:[#allocation4 + $0x18] sm:$0xff]
          %v553 = vld [vmem:[#allocation4 + $0x20] sm:$0xff]
          %555 = vset.pattern.permute.xlu0 0
          %556 = vperm.xlu0 %555, %v549
          %v557 = vpop.permute.xlu0 %556
          %560 = vset.pattern.permute.xlu0 0
          %561 = vperm.xlu0 %560, %v550
          %v562 = vpop.permute.xlu0 %561
          %565 = vset.pattern.permute.xlu0 0
          %566 = vperm.xlu0 %565, %v551
          %v567 = vpop.permute.xlu0 %566
          %570 = vset.pattern.permute.xlu0 0
          %571 = vperm.xlu0 %570, %v552
          %v572 = vpop.permute.xlu0 %571
          %575 = vset.pattern.permute.xlu0 0
          %576 = vperm.xlu0 %575, %v553
          %v577 = vpop.permute.xlu0 %576
          %v579 = vmul.f32 %v344, %v557
          %v580 = vmul.f32 %v346, %v557
          %v581 = vmul.f32 %v348, %v562
          %v582 = vmul.f32 %v350, %v562
          %v583 = vmul.f32 %v354, %v567
          %v584 = vmul.f32 %v356, %v567
          %v585 = vmul.f32 %v358, %v572
          %v586 = vmul.f32 %v360, %v572
          %v587 = vmul.f32 %v364, %v577
          %v588 = vmul.f32 %v366, %v577
          %v589 = vld [vmem:[#allocation5] sm:$0xff]
          %v590 = vld [vmem:[#allocation5 + $0x8] sm:$0xff]
          %v591 = vld [vmem:[#allocation5 + $0x10] sm:$0xff]
          %v592 = vld [vmem:[#allocation5 + $0x18] sm:$0xff]
          %v593 = vld [vmem:[#allocation5 + $0x20] sm:$0xff]
          %595 = vset.pattern.permute.xlu0 0
          %596 = vperm.xlu0 %595, %v589
          %v597 = vpop.permute.xlu0 %596
          %600 = vset.pattern.permute.xlu0 0
          %601 = vperm.xlu0 %600, %v590
          %v602 = vpop.permute.xlu0 %601
          %605 = vset.pattern.permute.xlu0 0
          %606 = vperm.xlu0 %605, %v591
          %v607 = vpop.permute.xlu0 %606
          %610 = vset.pattern.permute.xlu0 0
          %611 = vperm.xlu0 %610, %v592
          %v612 = vpop.permute.xlu0 %611
          %615 = vset.pattern.permute.xlu0 0
          %616 = vperm.xlu0 %615, %v593
          %v617 = vpop.permute.xlu0 %616
          %v619 = vadd.f32 %v579, %v597
          %v620 = vadd.f32 %v580, %v597
          %v621 = vadd.f32 %v581, %v602
          %v622 = vadd.f32 %v582, %v602
          %v623 = vadd.f32 %v583, %v607
          %v624 = vadd.f32 %v584, %v607
          %v625 = vadd.f32 %v585, %v612
          %v626 = vadd.f32 %v586, %v612
          %v627 = vadd.f32 %v587, %v617
          %v628 = vadd.f32 %v588, %v617
          %629 = vst [vmem:[%s227] sm:$0xff] %v619
          %630 = vst [vmem:[%s227 + $0x8] sm:$0xff] %v620
          %631 = vst [vmem:[%s227 + $0x10] sm:$0xff] %v621
          %632 = vst [vmem:[%s227 + $0x18] sm:$0xff] %v622
          %633 = vst [vmem:[%s227 + $0x20] sm:$0xff] %v623
          %634 = vst [vmem:[%s227 + $0x28] sm:$0xff] %v624
          %635 = vst [vmem:[%s227 + $0x30] sm:$0xff] %v625
          %636 = vst [vmem:[%s227 + $0x38] sm:$0xff] %v626
          %637 = vst [vmem:[%s227 + $0x40] sm:$0xff] %v627
          %638 = vst [vmem:[%s227 + $0x48] sm:$0xff] %v628
        $region52: #{tpu_custom_call.1} parent=35 // pred_fallthru
          _
        %s639 = sand.u32 %s130, 1
        %s640 = scalar_lea.sflag [#allocation8], %s639
        %s641 = sand.u32 %s130, 1
        %s642 = smul.addr %s641, 80
        %s643 = scalar_lea.vmem [#allocation9], %s642
        // Predicated region
        $region57: #{tpu_custom_call.1} parent=35 // pred_check
          %p644 = pneg %p140
        $region58: #{tpu_custom_call.1} parent=35 // pred_check_branch
          %646 = sbr.rel (%p644) target = $region60
        $region59: #{tpu_custom_call.1} parent=35 // pred_region
          %s648 = ssub.s32 1280, 1280
          %649 = vsyncadd %s640, %s648
          %s650 = smul.addr %s26, 10
          %s651 = smul.addr %s650, 128
          %s652 = scalar_lea.hbm %s4, %s651
          %s653 = sshll.u32 %s643, 4
          %s654 = int_to_ptr.vmem [resolvable:$true] %s653
          %659 = dma.vmem_to_hbm [thread:$0]  %s654, 1280, %s652, %s640, 256, 256, 16
        $region60: #{tpu_custom_call.1} parent=35 // pred_fallthru
          _
      $region36: #{tpu_custom_call.1} parent=5 // pred_fallthru
        _
      %p660 = scmp.le.s32.totalorder 2, %s16
      // Predicated region
      $region61: #{tpu_custom_call.1} parent=5 // pred_check
        %p661 = pneg %p660
      $region62: #{tpu_custom_call.1} parent=5 // pred_check_branch
        %663 = sbr.rel (%p661) target = $region64
      $region63: #{tpu_custom_call.1} parent=5 // pred_region
        %s664 = ssub.s32 %s16, 2
        // Predicated region
        $region65: #{tpu_custom_call.1} parent=63 // pred_check
          %p665 = pneg %p146
        $region66: #{tpu_custom_call.1} parent=63 // pred_check_branch
          %667 = sbr.rel (%p665) target = $region68
        $region67: #{tpu_custom_call.1} parent=63 // pred_region
          %s668 = sand.u32 %s131, 1
          %s669 = scalar_lea.sflag [#allocation8], %s668
          %s670 = sand.u32 %s131, 1
          %s671 = smul.addr %s670, 80
          %s672 = scalar_lea.vmem [#allocation9], %s671
          %673 = dma.done %s669, 1280
        $region68: #{tpu_custom_call.1} parent=63 // pred_fallthru
          _
      $region64: #{tpu_custom_call.1} parent=5 // pred_fallthru
        _
    $region6: #{tpu_custom_call.1} parent=1 // loop_footer
      %s20 = sadd.s32 1, %s16
    $region7: #{tpu_custom_call.1} parent=1 // loop_footer_branch
      %15 = sbr.rel target = $region3
    $region8: #{tpu_custom_call.1} parent=1 // loop_exit
      _
    %674 = vsyncpa [#allocation7], 1
    %s675 = scalar_lea.sflag [#allocation7], 1
    %676 = vsyncpa %s675, 1
    %677 = vsyncpa [#allocation8], 1
    %s678 = scalar_lea.sflag [#allocation8], 1
    %679 = vsyncpa %s678, 1

</llo_original>
